<compile_context>
chip_gen: v7x
topology: tpu7x:2x2x1
jax: 0.10.0
libtpu: 0.0.40
codegen_flags: <defaults>
</compile_context>

<pallas_src>
import jax
import jax.numpy as jnp
from jax import lax
from jax.experimental import pallas as pl
from jax.experimental.pallas import tpu as pltpu


def mlp_kernel(x_ref, w1_ref, b1_ref, w2_ref, b2_ref, w3_ref, b3_ref, out_ref):
    # x_ref: (TILE_B, input_size), natural batch-major layout straight from HBM.
    xb = x_ref[...]
    if xb.dtype != jnp.bfloat16:                      # only cast if the producer gave f32
        xb = xb.astype(jnp.bfloat16)

    # layer1: (hidden, in) x (TILE_B, in) contracted on the feature axis -> (hidden, TILE_B)
    # "NT" dimension numbers (same pattern as q @ k.T in the TPU flash-attention kernel).
    h1 = lax.dot_general(w1_ref[...], xb, (((1,), (1,)), ((), ())),
                         preferred_element_type=jnp.float32)
    h1 = jnp.maximum(h1 + b1_ref[...], 0.0)           # bias + ReLU in f32

    # dropout(p=0.5) skipped: inference path (training=False)

    # layer2: (half, hidden) @ (hidden, TILE_B) -> (half, TILE_B)
    h2 = jnp.dot(w2_ref[...], h1.astype(jnp.bfloat16),
                 preferred_element_type=jnp.float32)
    h2 = jnp.maximum(h2 + b2_ref[...], 0.0)

    # layer3: tiny head.  For output_size == 1 use VPU broadcast-mul + XLU sublane
    # reduce instead of a K=half, N=1 MXU matmul tail.
    w3 = w3_ref[...].astype(jnp.float32)              # (half, output_size)
    if w3_ref.shape[1] == 1:
        h3 = jnp.sum(w3 * h2, axis=0, keepdims=True)                  # (1, TILE_B)
    else:
        h3 = lax.dot_general(w3, h2, (((0,), (0,)), ((), ())),
                             preferred_element_type=jnp.float32)      # (out, TILE_B)
    h3 = h3 + b3_ref[...]

    out_ref[...] = jax.nn.sigmoid(h3).astype(out_ref.dtype)


def _round_up(n, m):
    return pl.cdiv(n, m) * m


def neural_network_forward(x, params, *, tile_b=8192):
    """x: [batch, input_size] (bf16 preferred; f32 accepted).
    params: dict (see init_params). Returns [batch, output_size] f32."""
    w1, b1, w2, b2, w3, b3 = (params["w1"], params["b1"], params["w2"],
                              params["b2"], params["w3"], params["b3"])
    batch, input_size = x.shape
    hidden_size = w1.shape[0]
    half = w2.shape[0]
    output_size = w3.shape[1]

    # Lane-dense batch tile: force a multiple of 128 (defensive against e.g. tile_b=300),
    # shrink only for tiny batches.  Default keeps the per-step x DMA >= ~1 MiB in bf16.
    tile_b = max(128, _round_up(int(tile_b), 128))
    tile_b = min(tile_b, _round_up(batch, 128))
    n_tiles = pl.cdiv(batch, tile_b)

    # v7x megacore: if the whole (large) batch fits in one tile, split it so the
    # "parallel" batch axis can shard across both TensorCores without dropping the
    # per-step tile below the DMA sweet spot.
    if n_tiles == 1 and batch >= 2 * 4096:
        tile_b = _round_up(pl.cdiv(batch, 2), 128)
        n_tiles = pl.cdiv(batch, tile_b)

    eff_rows = n_tiles * tile_b
    flops = 2 * eff_rows * (input_size * hidden_size
                            + hidden_size * half
                            + half * output_size)
    bytes_accessed = int(
        x.size * x.dtype.itemsize
        + sum(int(p.size) * p.dtype.itemsize for p in (w1, b1, w2, b2, w3, b3))
        + batch * output_size * 4)

    # Scoped-VMEM estimate: x + out double-buffered, weights resident, small slack.
    # Only raise the limit when we'd exceed v5e's 16 MiB scoped default (physical is
    # 128 MiB on v5e/v6e, 64 MiB on v7x — huge tiles remain the caller's job to size).
    vmem_est = (2 * tile_b * input_size * x.dtype.itemsize
                + 2 * output_size * tile_b * 4
                + sum(int(p.size) * p.dtype.itemsize for p in (w1, b1, w2, b2, w3, b3))
                + (2 << 20))
    vmem_limit = int(vmem_est + (4 << 20)) if vmem_est > (16 << 20) else None

    out_t = pl.pallas_call(
        mlp_kernel,
        out_shape=jax.ShapeDtypeStruct((output_size, batch), jnp.float32),
        grid=(n_tiles,),
        in_specs=[
            pl.BlockSpec((tile_b, input_size), lambda i: (i, 0)),   # x: tiled over batch
            pl.BlockSpec(w1.shape, lambda i: (0, 0)),               # weights: VMEM-resident
            pl.BlockSpec(b1.shape, lambda i: (0, 0)),
            pl.BlockSpec(w2.shape, lambda i: (0, 0)),
            pl.BlockSpec(b2.shape, lambda i: (0, 0)),
            pl.BlockSpec(w3.shape, lambda i: (0, 0)),
            pl.BlockSpec(b3.shape, lambda i: (0, 0)),
        ],
        out_specs=pl.BlockSpec((output_size, tile_b), lambda i: (0, i)),  # lane-dense
        compiler_params=pltpu.CompilerParams(
            dimension_semantics=("parallel",),        # megacore sharding on v7x
            vmem_limit_bytes=vmem_limit),
        cost_estimate=pl.CostEstimate(
            flops=flops,
            transcendentals=eff_rows * output_size,
            bytes_accessed=bytes_accessed),
    )(x, w1, b1, w2, b2, w3, b3)

    # Back to the PyTorch-facing (batch, output_size) layout.
    return out_t.T


def init_params(key, input_size, hidden_size, output_size, *, weight_dtype=jnp.bfloat16):
    """Matches torch xavier_uniform_/zeros_ init. w1/w2 keep PyTorch [out, in] layout
    (feature-major kernel consumes them directly); w3 is stored [in, out] so the
    output_size==1 VPU path broadcasts its column with no in-kernel transpose.
    Biases stay f32 columns (features, 1).
    TODO(synk): fp8 weights (v7x-only MXU fp8 path) are an opt-in accuracy trade; not enabled."""
    half = hidden_size // 2
    k1, k2, k3 = jax.random.split(key, 3)

    def xavier(k, fan_in, fan_out, shape):
        limit = (6.0 / (fan_in + fan_out)) ** 0.5
        return jax.random.uniform(k, shape, jnp.float32, -limit, limit).astype(weight_dtype)

    return {
        "w1": xavier(k1, input_size, hidden_size, (hidden_size, input_size)),
        "b1": jnp.zeros((hidden_size, 1), jnp.float32),
        "w2": xavier(k2, hidden_size, half, (half, hidden_size)),
        "b2": jnp.zeros((half, 1), jnp.float32),
        "w3": xavier(k3, half, output_size, (half, output_size)),
        "b3": jnp.zeros((output_size, 1), jnp.float32),
    }


def reference_forward(x, p):
    """Pure-JAX reference mirroring the kernel's math (bf16 MXU inputs, f32 accumulation).
    Note: bf16 weights/activations deviate slightly from the original f32 PyTorch model;
    this validates the kernel against its own (inference-grade) numerics."""
    xb = x if x.dtype == jnp.bfloat16 else x.astype(jnp.bfloat16)
    h1 = lax.dot_general(p["w1"], xb, (((1,), (1,)), ((), ())),
                         preferred_element_type=jnp.float32)
    h1 = jnp.maximum(h1 + p["b1"], 0.0)
    h2 = jnp.dot(p["w2"], h1.astype(p["w2"].dtype),
                 preferred_element_type=jnp.float32)
    h2 = jnp.maximum(h2 + p["b2"], 0.0)
    w3 = p["w3"].astype(jnp.float32)
    if w3.shape[1] == 1:
        h3 = jnp.sum(w3 * h2, axis=0, keepdims=True)
    else:
        h3 = lax.dot_general(w3, h2, (((0,), (0,)), ((), ())),
                             preferred_element_type=jnp.float32)
    return jax.nn.sigmoid(h3 + p["b3"]).T


if __name__ == "__main__":
    input_size, hidden_size, output_size = 64, 32, 1
    batch = 2

    key = jax.random.PRNGKey(0)
    k_params, k_x = jax.random.split(key)
    params = init_params(k_params, input_size, hidden_size, output_size)
    # Producer emits bf16 directly (no extra wrapper-side cast pass over x).
    x = jax.random.normal(k_x, (batch, input_size), jnp.bfloat16)

    out = neural_network_forward(x, params)
    out = jax.block_until_ready(out)

    ref = reference_forward(x, params)
    assert out.shape == (batch, output_size), out.shape
    assert bool(jnp.isfinite(out).all()), "non-finite output"
    assert bool(jnp.allclose(out, ref, atol=1e-3)), "mismatch vs reference"

    print("KERNEL_OK")
</pallas_src>

<mosaic_0001>
module attributes {stable_mosaic.version = 11 : i64} {
  func.func @mlp_kernel(%arg0: i32, %arg1: memref<128x64xbf16, #tpu.memory_space<vmem>>, %arg2: memref<32x64xbf16, #tpu.memory_space<vmem>>, %arg3: memref<32x1xf32, #tpu.memory_space<vmem>>, %arg4: memref<16x32xbf16, #tpu.memory_space<vmem>>, %arg5: memref<16x1xf32, #tpu.memory_space<vmem>>, %arg6: memref<16x1xbf16, #tpu.memory_space<vmem>>, %arg7: memref<1x1xf32, #tpu.memory_space<vmem>>, %arg8: memref<1x128xf32, #tpu.memory_space<vmem>>) attributes {dimension_semantics = [#tpu.dimension_semantics<parallel>], iteration_bounds = array<i64: 1>, scalar_prefetch = 0 : i64, scratch_operands = 0 : i64, tpu.core_type = #tpu.core_type<tc>, window_params = [{transform_indices = @transform_0, window_bounds = array<i64: 128, 64>}, {pipeline_mode = #tpu.pipeline_mode<synchronous>, transform_indices = @transform_1, window_bounds = array<i64: 32, 64>}, {pipeline_mode = #tpu.pipeline_mode<synchronous>, transform_indices = @transform_2, window_bounds = array<i64: 32, 1>}, {pipeline_mode = #tpu.pipeline_mode<synchronous>, transform_indices = @transform_3, window_bounds = array<i64: 16, 32>}, {pipeline_mode = #tpu.pipeline_mode<synchronous>, transform_indices = @transform_4, window_bounds = array<i64: 16, 1>}, {pipeline_mode = #tpu.pipeline_mode<synchronous>, transform_indices = @transform_5, window_bounds = array<i64: 16, 1>}, {pipeline_mode = #tpu.pipeline_mode<synchronous>, transform_indices = @transform_6, window_bounds = array<i64: 1, 1>}, {transform_indices = @transform_7, window_bounds = array<i64: 1, 128>}]} {
    %c0 = arith.constant 0 : index
    %c0_0 = arith.constant 0 : index
    %0 = vector.load %arg1[%c0, %c0_0] : memref<128x64xbf16, #tpu.memory_space<vmem>>, vector<128x64xbf16>
    %c0_1 = arith.constant 0 : index
    %c0_2 = arith.constant 0 : index
    %1 = vector.load %arg2[%c0_1, %c0_2] : memref<32x64xbf16, #tpu.memory_space<vmem>>, vector<32x64xbf16>
    %cst = arith.constant dense<0.000000e+00> : vector<32x128xf32>
    %2 = tpu.matmul %1, %0, %cst {dimension_numbers = #tpu.dot_dimension_numbers<[1], [1], [0], [0], [0, 0, 1, 0], [], []>} : vector<32x64xbf16>, vector<128x64xbf16>, vector<32x128xf32> -> vector<32x128xf32>
    %c0_3 = arith.constant 0 : index
    %c0_4 = arith.constant 0 : index
    %3 = vector.load %arg3[%c0_3, %c0_4] : memref<32x1xf32, #tpu.memory_space<vmem>>, vector<32x1xf32>
    %4 = vector.broadcast %3 : vector<32x1xf32> to vector<32x128xf32>
    %5 = arith.addf %2, %4 : vector<32x128xf32>
    %cst_5 = arith.constant 0.000000e+00 : f32
    %6 = vector.broadcast %cst_5 : f32 to vector<32x128xf32>
    %7 = arith.maximumf %5, %6 : vector<32x128xf32>
    %c0_6 = arith.constant 0 : index
    %c0_7 = arith.constant 0 : index
    %8 = vector.load %arg4[%c0_6, %c0_7] : memref<16x32xbf16, #tpu.memory_space<vmem>>, vector<16x32xbf16>
    %9 = arith.truncf %7 : vector<32x128xf32> to vector<32x128xbf16>
    %cst_8 = arith.constant dense<0.000000e+00> : vector<16x128xf32>
    %10 = tpu.matmul %8, %9, %cst_8 {dimension_numbers = #tpu.dot_dimension_numbers<[1], [0], [0], [1], [0, 0, 1, 1], [], []>} : vector<16x32xbf16>, vector<32x128xbf16>, vector<16x128xf32> -> vector<16x128xf32>
    %c0_9 = arith.constant 0 : index
    %c0_10 = arith.constant 0 : index
    %11 = vector.load %arg5[%c0_9, %c0_10] : memref<16x1xf32, #tpu.memory_space<vmem>>, vector<16x1xf32>
    %12 = vector.broadcast %11 : vector<16x1xf32> to vector<16x128xf32>
    %13 = arith.addf %10, %12 : vector<16x128xf32>
    %cst_11 = arith.constant 0.000000e+00 : f32
    %14 = vector.broadcast %cst_11 : f32 to vector<16x128xf32>
    %15 = arith.maximumf %13, %14 : vector<16x128xf32>
    %c0_12 = arith.constant 0 : index
    %c0_13 = arith.constant 0 : index
    %16 = vector.load %arg6[%c0_12, %c0_13] : memref<16x1xbf16, #tpu.memory_space<vmem>>, vector<16x1xbf16>
    %17 = arith.extf %16 : vector<16x1xbf16> to vector<16x1xf32>
    %18 = vector.broadcast %17 : vector<16x1xf32> to vector<16x128xf32>
    %19 = arith.mulf %18, %15 : vector<16x128xf32>
    %cst_14 = arith.constant dense<0.000000e+00> : vector<128xf32>
    %20 = vector.multi_reduction <add>, %19, %cst_14 [0] : vector<16x128xf32> to vector<128xf32>
    %21 = vector.shape_cast %20 : vector<128xf32> to vector<1x128xf32>
    %c0_15 = arith.constant 0 : index
    %c0_16 = arith.constant 0 : index
    %22 = vector.load %arg7[%c0_15, %c0_16] : memref<1x1xf32, #tpu.memory_space<vmem>>, vector<1x1xf32>
    %23 = vector.broadcast %22 : vector<1x1xf32> to vector<1x128xf32>
    %24 = arith.addf %21, %23 : vector<1x128xf32>
    %25 = arith.negf %24 : vector<1x128xf32>
    %26 = math.exp %25 : vector<1x128xf32>
    %cst_17 = arith.constant 1.000000e+00 : f32
    %27 = vector.broadcast %cst_17 : f32 to vector<1x128xf32>
    %28 = arith.addf %27, %26 : vector<1x128xf32>
    %29 = arith.divf %27, %28 : vector<1x128xf32>
    %c0_18 = arith.constant 0 : index
    %c0_19 = arith.constant 0 : index
    %30 = vector.load %arg8[%c0_18, %c0_19] : memref<1x128xf32, #tpu.memory_space<vmem>>, vector<1x128xf32>
    tpu.vector_store %arg8[%c0_18, %c0_19], %29 {strides = array<i32>} : memref<1x128xf32, #tpu.memory_space<vmem>>, vector<1x128xf32>,
    return
  }
  func.func @transform_0(%arg0: i32) -> (i32, i32) {
    %c0_i32 = arith.constant 0 : i32
    %c0_i32_0 = arith.constant 0 : i32
    return %arg0, %c0_i32 : i32, i32
  }
  func.func @transform_1(%arg0: i32) -> (i32, i32) {
    %c0_i32 = arith.constant 0 : i32
    %c0_i32_0 = arith.constant 0 : i32
    %c0_i32_1 = arith.constant 0 : i32
    return %c0_i32, %c0_i32_0 : i32, i32
  }
  func.func @transform_2(%arg0: i32) -> (i32, i32) {
    %c0_i32 = arith.constant 0 : i32
    %c0_i32_0 = arith.constant 0 : i32
    %c0_i32_1 = arith.constant 0 : i32
    return %c0_i32, %c0_i32_0 : i32, i32
  }
  func.func @transform_3(%arg0: i32) -> (i32, i32) {
    %c0_i32 = arith.constant 0 : i32
    %c0_i32_0 = arith.constant 0 : i32
    %c0_i32_1 = arith.constant 0 : i32
    return %c0_i32, %c0_i32_0 : i32, i32
  }
  func.func @transform_4(%arg0: i32) -> (i32, i32) {
    %c0_i32 = arith.constant 0 : i32
    %c0_i32_0 = arith.constant 0 : i32
    %c0_i32_1 = arith.constant 0 : i32
    return %c0_i32, %c0_i32_0 : i32, i32
  }
  func.func @transform_5(%arg0: i32) -> (i32, i32) {
    %c0_i32 = arith.constant 0 : i32
    %c0_i32_0 = arith.constant 0 : i32
    %c0_i32_1 = arith.constant 0 : i32
    return %c0_i32, %c0_i32_0 : i32, i32
  }
  func.func @transform_6(%arg0: i32) -> (i32, i32) {
    %c0_i32 = arith.constant 0 : i32
    %c0_i32_0 = arith.constant 0 : i32
    %c0_i32_1 = arith.constant 0 : i32
    return %c0_i32, %c0_i32_0 : i32, i32
  }
  func.func @transform_7(%arg0: i32) -> (i32, i32) {
    %c0_i32 = arith.constant 0 : i32
    %c0_i32_0 = arith.constant 0 : i32
    return %c0_i32, %arg0 : i32, i32
  }
}

</mosaic_0001>

<llo_original>
// kernel: tpu_custom_call.1
$region0: #{tpu_custom_call.1}
  #allocation0 [shape = 'u32[]', space=smem, size = 0x4, offset = 0x4, fixed_abs, tag = 'smem constant byte address 0x4 - core index']
  #allocation1 [shape = 'u32[144,128]{1,0:T(1,128)}', space=vmem, size = 0x12000, scoped, tag = 'internal scratch']
  #allocation2 [shape = 'f32[1,1]{1,0:T(1,128)S(1)}', space=vmem, size = 0x200, scoped, tag = 'scoped memory for tpu_custom_call.1']
  %s0 = inlined_call_operand.vmem [shape: bf16[2,64], index: 0, kind: input, shape index: {}]
  %s1 = inlined_call_operand.vmem [shape: bf16[32,64], index: 1, kind: input, shape index: {}]
  %s2 = inlined_call_operand.vmem [shape: f32[32,1], index: 2, kind: input, shape index: {}]
  %s3 = inlined_call_operand.vmem [shape: bf16[16,32], index: 3, kind: input, shape index: {}]
  %s4 = inlined_call_operand.vmem [shape: f32[16,1], index: 4, kind: input, shape index: {}]
  %s5 = inlined_call_operand.vmem [shape: bf16[16,1], index: 5, kind: input, shape index: {}]
  %s6 = inlined_call_operand.<no memory space> [shape: f32[1,1], index: 6, kind: input, shape index: {}]
  %s7 = inlined_call_operand.hbm [shape: f32[1,2], index: 7, kind: output, shape index: {}]
  %s8 = sld [smem:[#allocation0]]
  $region38: #{tpu_custom_call.1} parent=0
    _
  %s10 = ssub.s32 1, %s8
  %s11 = scalar_select 0, %s10, %s8
  %v12 = vstv %s6
  %13 = vst [vmem:[#allocation2] sm:$0x1] %v12
  $region1: #{tpu_custom_call.1} parent=0
    #allocation3 [shape = 'u8[512]{0}', space=vmem, size = 0x400, scoped, tag = 'output window, operand 0, single buffered']
    #allocation4 [shape = 's32[1]{0}', space=sflag, size = 0x4, scoped, tag = 'scoped memory for tpu_custom_call.1']
    %14 = vsyncpa [#allocation4], 0
    // Predicated region
    $region2: #{tpu_custom_call.1} parent=1 // pred_check
      _
    $region3: #{tpu_custom_call.1} parent=1 // pred_check_branch
      %16 = sbr.rel (0) target = $region5
    $region4: #{tpu_custom_call.1} parent=1 // pred_region
      _
    $region5: #{tpu_custom_call.1} parent=1 // pred_fallthru
      _
    // Predicated region
    $region6: #{tpu_custom_call.1} parent=1 // pred_check
      _
    $region7: #{tpu_custom_call.1} parent=1 // pred_check_branch
      %18 = sbr.rel (0) target = $region9
    $region8: #{tpu_custom_call.1} parent=1 // pred_region
      _
    $region9: #{tpu_custom_call.1} parent=1 // pred_fallthru
      _
    // Predicated region
    $region10: #{tpu_custom_call.1} parent=1 // pred_check
      _
    $region11: #{tpu_custom_call.1} parent=1 // pred_check_branch
      %20 = sbr.rel (0) target = $region13
    $region12: #{tpu_custom_call.1} parent=1 // pred_region
      _
    $region13: #{tpu_custom_call.1} parent=1 // pred_fallthru
      _
    // Predicated region
    $region14: #{tpu_custom_call.1} parent=1 // pred_check
      _
    $region15: #{tpu_custom_call.1} parent=1 // pred_check_branch
      %22 = sbr.rel (0) target = $region17
    $region16: #{tpu_custom_call.1} parent=1 // pred_region
      _
    $region17: #{tpu_custom_call.1} parent=1 // pred_fallthru
      _
    // Predicated region
    $region18: #{tpu_custom_call.1} parent=1 // pred_check
      _
    $region19: #{tpu_custom_call.1} parent=1 // pred_check_branch
      %24 = sbr.rel (0) target = $region21
    $region20: #{tpu_custom_call.1} parent=1 // pred_region
      _
    $region21: #{tpu_custom_call.1} parent=1 // pred_fallthru
      _
    // Predicated region
    $region22: #{tpu_custom_call.1} parent=1 // pred_check
      _
    $region23: #{tpu_custom_call.1} parent=1 // pred_check_branch
      %26 = sbr.rel (0) target = $region25
    $region24: #{tpu_custom_call.1} parent=1 // pred_region
      _
    $region25: #{tpu_custom_call.1} parent=1 // pred_fallthru
      _
    // Predicated region
    $region26: #{tpu_custom_call.1} parent=1 // pred_check
      _
    $region27: #{tpu_custom_call.1} parent=1 // pred_check_branch
      %28 = sbr.rel (0) target = $region29
    $region28: #{tpu_custom_call.1} parent=1 // pred_region
      _
    $region29: #{tpu_custom_call.1} parent=1 // pred_fallthru
      _
    %v30 = vld [vmem:[%s0] sm:$0x1]
    %v31 = vld [vmem:[%s0 + $0x1] sm:$0x1]
    %v32 = vld [vmem:[%s0 + $0x2] sm:$0x1]
    %v33 = vld [vmem:[%s0 + $0x3] sm:$0x1]
    %v34 = vld [vmem:[%s0 + $0x4] sm:$0x1]
    %v35 = vld [vmem:[%s0 + $0x5] sm:$0x1]
    %v36 = vld [vmem:[%s0 + $0x6] sm:$0x1]
    %v37 = vld [vmem:[%s0 + $0x7] sm:$0x1]
    %v38 = vld [vmem:[%s0 + $0x8] sm:$0x1]
    %v39 = vld [vmem:[%s0 + $0x9] sm:$0x1]
    %v40 = vld [vmem:[%s0 + $0xa] sm:$0x1]
    %v41 = vld [vmem:[%s0 + $0xb] sm:$0x1]
    %v42 = vld [vmem:[%s0 + $0xc] sm:$0x1]
    %v43 = vld [vmem:[%s0 + $0xd] sm:$0x1]
    %v44 = vld [vmem:[%s0 + $0xe] sm:$0x1]
    %v45 = vld [vmem:[%s0 + $0xf] sm:$0x1]
    %v46 = vld [vmem:[%s0 + $0x10] sm:$0x1]
    %v47 = vld [vmem:[%s0 + $0x11] sm:$0x1]
    %v48 = vld [vmem:[%s0 + $0x12] sm:$0x1]
    %v49 = vld [vmem:[%s0 + $0x13] sm:$0x1]
    %v50 = vld [vmem:[%s0 + $0x14] sm:$0x1]
    %v51 = vld [vmem:[%s0 + $0x15] sm:$0x1]
    %v52 = vld [vmem:[%s0 + $0x16] sm:$0x1]
    %v53 = vld [vmem:[%s0 + $0x17] sm:$0x1]
    %v54 = vld [vmem:[%s0 + $0x18] sm:$0x1]
    %v55 = vld [vmem:[%s0 + $0x19] sm:$0x1]
    %v56 = vld [vmem:[%s0 + $0x1a] sm:$0x1]
    %v57 = vld [vmem:[%s0 + $0x1b] sm:$0x1]
    %v58 = vld [vmem:[%s0 + $0x1c] sm:$0x1]
    %v59 = vld [vmem:[%s0 + $0x1d] sm:$0x1]
    %v60 = vld [vmem:[%s0 + $0x1e] sm:$0x1]
    %v61 = vld [vmem:[%s0 + $0x1f] sm:$0x1]
    %v62 = vld [vmem:[%s0 + $0x20] sm:$0x1]
    %v63 = vld [vmem:[%s0 + $0x21] sm:$0x1]
    %v64 = vld [vmem:[%s0 + $0x22] sm:$0x1]
    %v65 = vld [vmem:[%s0 + $0x23] sm:$0x1]
    %v66 = vld [vmem:[%s0 + $0x24] sm:$0x1]
    %v67 = vld [vmem:[%s0 + $0x25] sm:$0x1]
    %v68 = vld [vmem:[%s0 + $0x26] sm:$0x1]
    %v69 = vld [vmem:[%s0 + $0x27] sm:$0x1]
    %v70 = vld [vmem:[%s0 + $0x28] sm:$0x1]
    %v71 = vld [vmem:[%s0 + $0x29] sm:$0x1]
    %v72 = vld [vmem:[%s0 + $0x2a] sm:$0x1]
    %v73 = vld [vmem:[%s0 + $0x2b] sm:$0x1]
    %v74 = vld [vmem:[%s0 + $0x2c] sm:$0x1]
    %v75 = vld [vmem:[%s0 + $0x2d] sm:$0x1]
    %v76 = vld [vmem:[%s0 + $0x2e] sm:$0x1]
    %v77 = vld [vmem:[%s0 + $0x2f] sm:$0x1]
    %v78 = vld [vmem:[%s0 + $0x30] sm:$0x1]
    %v79 = vld [vmem:[%s0 + $0x31] sm:$0x1]
    %v80 = vld [vmem:[%s0 + $0x32] sm:$0x1]
    %v81 = vld [vmem:[%s0 + $0x33] sm:$0x1]
    %v82 = vld [vmem:[%s0 + $0x34] sm:$0x1]
    %v83 = vld [vmem:[%s0 + $0x35] sm:$0x1]
    %v84 = vld [vmem:[%s0 + $0x36] sm:$0x1]
    %v85 = vld [vmem:[%s0 + $0x37] sm:$0x1]
    %v86 = vld [vmem:[%s0 + $0x38] sm:$0x1]
    %v87 = vld [vmem:[%s0 + $0x39] sm:$0x1]
    %v88 = vld [vmem:[%s0 + $0x3a] sm:$0x1]
    %v89 = vld [vmem:[%s0 + $0x3b] sm:$0x1]
    %v90 = vld [vmem:[%s0 + $0x3c] sm:$0x1]
    %v91 = vld [vmem:[%s0 + $0x3d] sm:$0x1]
    %v92 = vld [vmem:[%s0 + $0x3e] sm:$0x1]
    %v93 = vld [vmem:[%s0 + $0x3f] sm:$0x1]
    %v94 = vld [vmem:[%s1] sm:$0xf]
    %v95 = vld [vmem:[%s1 + $0x4] sm:$0xf]
    %v96 = vld [vmem:[%s1 + $0x8] sm:$0xf]
    %v97 = vld [vmem:[%s1 + $0xc] sm:$0xf]
    %v98 = vld [vmem:[%s2] sm:$0xff]
    %v99 = vld [vmem:[%s2 + $0x8] sm:$0xff]
    %v100 = vld [vmem:[%s2 + $0x10] sm:$0xff]
    %v101 = vld [vmem:[%s2 + $0x18] sm:$0xff]
    %103 = vset.pattern.permute.xlu0 0
    %104 = vperm.xlu0 %103, %v98
    %v105 = vpop.permute.xlu0 %104
    %108 = vset.pattern.permute.xlu0 0
    %109 = vperm.xlu0 %108, %v99
    %v110 = vpop.permute.xlu0 %109
    %113 = vset.pattern.permute.xlu0 0
    %114 = vperm.xlu0 %113, %v100
    %v115 = vpop.permute.xlu0 %114
    %118 = vset.pattern.permute.xlu0 0
    %119 = vperm.xlu0 %118, %v101
    %v120 = vpop.permute.xlu0 %119
    %v126 = vunpack.c.l.b16 %v94
    %v127 = vunpack.c.l.b16 %v95
    %v128 = vunpack.c.l.b16 %v96
    %v129 = vunpack.c.l.b16 %v97
    %v130 = vpack.c.b16 %v127, %v126
    %v131 = vpack.c.b16 %v129, %v128
    %v196 = vcombine.low %v30, %v31
    %v197 = vcombine.low %v32, %v33
    %v198 = vcombine.low %v34, %v35
    %v199 = vcombine.low %v36, %v37
    %v201 = vunpack.c.l.s4 1966171168
    %v202 = vunpack.c.0.s8 %v201
    %v203 = vlaneseq
    %v204 = vshrl.u32 %v203, 7
    %v205 = vsub.s32 %v202, %v204
    %v206 = vrot.slane %v196, %v205
    %v208 = vunpack.c.l.s4 1966171168
    %v209 = vunpack.c.0.s8 %v208
    %v210 = vlaneseq
    %v211 = vshrl.u32 %v210, 7
    %v212 = vsub.s32 %v209, %v211
    %v213 = vrot.slane %v197, %v212
    %v215 = vunpack.c.l.s4 1966171168
    %v216 = vunpack.c.0.s8 %v215
    %v217 = vlaneseq
    %v218 = vshrl.u32 %v217, 7
    %v219 = vsub.s32 %v216, %v218
    %v220 = vrot.slane %v198, %v219
    %v222 = vunpack.c.l.s4 1966171168
    %v223 = vunpack.c.0.s8 %v222
    %v224 = vlaneseq
    %v225 = vshrl.u32 %v224, 7
    %v226 = vsub.s32 %v223, %v225
    %v227 = vrot.slane %v199, %v226
    %v228 = vcombine.low %v206, %v213
    %v229 = vcombine.low %v220, %v227
    %v231 = vunpack.c.l.s4 1966171168
    %v232 = vunpack.c.0.s8 %v231
    %v233 = vlaneseq
    %v234 = vshrl.u32 %v233, 7
    %v235 = vsub.s32 %v232, %v234
    %v236 = vrot.slane %v228, %v235
    %v238 = vunpack.c.l.s4 1966171168
    %v239 = vunpack.c.0.s8 %v238
    %v240 = vlaneseq
    %v241 = vshrl.u32 %v240, 7
    %v242 = vsub.s32 %v239, %v241
    %v243 = vrot.slane %v229, %v242
    %v244 = vcombine.low %v236, %v243
    %v245 = vcombine.low %v38, %v39
    %v246 = vcombine.low %v40, %v41
    %v247 = vcombine.low %v42, %v43
    %v248 = vcombine.low %v44, %v45
    %v250 = vunpack.c.l.s4 1966171168
    %v251 = vunpack.c.0.s8 %v250
    %v252 = vlaneseq
    %v253 = vshrl.u32 %v252, 7
    %v254 = vsub.s32 %v251, %v253
    %v255 = vrot.slane %v245, %v254
    %v257 = vunpack.c.l.s4 1966171168
    %v258 = vunpack.c.0.s8 %v257
    %v259 = vlaneseq
    %v260 = vshrl.u32 %v259, 7
    %v261 = vsub.s32 %v258, %v260
    %v262 = vrot.slane %v246, %v261
    %v264 = vunpack.c.l.s4 1966171168
    %v265 = vunpack.c.0.s8 %v264
    %v266 = vlaneseq
    %v267 = vshrl.u32 %v266, 7
    %v268 = vsub.s32 %v265, %v267
    %v269 = vrot.slane %v247, %v268
    %v271 = vunpack.c.l.s4 1966171168
    %v272 = vunpack.c.0.s8 %v271
    %v273 = vlaneseq
    %v274 = vshrl.u32 %v273, 7
    %v275 = vsub.s32 %v272, %v274
    %v276 = vrot.slane %v248, %v275
    %v277 = vcombine.low %v255, %v262
    %v278 = vcombine.low %v269, %v276
    %v280 = vunpack.c.l.s4 1966171168
    %v281 = vunpack.c.0.s8 %v280
    %v282 = vlaneseq
    %v283 = vshrl.u32 %v282, 7
    %v284 = vsub.s32 %v281, %v283
    %v285 = vrot.slane %v277, %v284
    %v287 = vunpack.c.l.s4 1966171168
    %v288 = vunpack.c.0.s8 %v287
    %v289 = vlaneseq
    %v290 = vshrl.u32 %v289, 7
    %v291 = vsub.s32 %v288, %v290
    %v292 = vrot.slane %v278, %v291
    %v293 = vcombine.low %v285, %v292
    %v294 = vcombine.low %v46, %v47
    %v295 = vcombine.low %v48, %v49
    %v296 = vcombine.low %v50, %v51
    %v297 = vcombine.low %v52, %v53
    %v299 = vunpack.c.l.s4 1966171168
    %v300 = vunpack.c.0.s8 %v299
    %v301 = vlaneseq
    %v302 = vshrl.u32 %v301, 7
    %v303 = vsub.s32 %v300, %v302
    %v304 = vrot.slane %v294, %v303
    %v306 = vunpack.c.l.s4 1966171168
    %v307 = vunpack.c.0.s8 %v306
    %v308 = vlaneseq
    %v309 = vshrl.u32 %v308, 7
    %v310 = vsub.s32 %v307, %v309
    %v311 = vrot.slane %v295, %v310
    %v313 = vunpack.c.l.s4 1966171168
    %v314 = vunpack.c.0.s8 %v313
    %v315 = vlaneseq
    %v316 = vshrl.u32 %v315, 7
    %v317 = vsub.s32 %v314, %v316
    %v318 = vrot.slane %v296, %v317
    %v320 = vunpack.c.l.s4 1966171168
    %v321 = vunpack.c.0.s8 %v320
    %v322 = vlaneseq
    %v323 = vshrl.u32 %v322, 7
    %v324 = vsub.s32 %v321, %v323
    %v325 = vrot.slane %v297, %v324
    %v326 = vcombine.low %v304, %v311
    %v327 = vcombine.low %v318, %v325
    %v329 = vunpack.c.l.s4 1966171168
    %v330 = vunpack.c.0.s8 %v329
    %v331 = vlaneseq
    %v332 = vshrl.u32 %v331, 7
    %v333 = vsub.s32 %v330, %v332
    %v334 = vrot.slane %v326, %v333
    %v336 = vunpack.c.l.s4 1966171168
    %v337 = vunpack.c.0.s8 %v336
    %v338 = vlaneseq
    %v339 = vshrl.u32 %v338, 7
    %v340 = vsub.s32 %v337, %v339
    %v341 = vrot.slane %v327, %v340
    %v342 = vcombine.low %v334, %v341
    %v343 = vcombine.low %v54, %v55
    %v344 = vcombine.low %v56, %v57
    %v345 = vcombine.low %v58, %v59
    %v346 = vcombine.low %v60, %v61
    %v348 = vunpack.c.l.s4 1966171168
    %v349 = vunpack.c.0.s8 %v348
    %v350 = vlaneseq
    %v351 = vshrl.u32 %v350, 7
    %v352 = vsub.s32 %v349, %v351
    %v353 = vrot.slane %v343, %v352
    %v355 = vunpack.c.l.s4 1966171168
    %v356 = vunpack.c.0.s8 %v355
    %v357 = vlaneseq
    %v358 = vshrl.u32 %v357, 7
    %v359 = vsub.s32 %v356, %v358
    %v360 = vrot.slane %v344, %v359
    %v362 = vunpack.c.l.s4 1966171168
    %v363 = vunpack.c.0.s8 %v362
    %v364 = vlaneseq
    %v365 = vshrl.u32 %v364, 7
    %v366 = vsub.s32 %v363, %v365
    %v367 = vrot.slane %v345, %v366
    %v369 = vunpack.c.l.s4 1966171168
    %v370 = vunpack.c.0.s8 %v369
    %v371 = vlaneseq
    %v372 = vshrl.u32 %v371, 7
    %v373 = vsub.s32 %v370, %v372
    %v374 = vrot.slane %v346, %v373
    %v375 = vcombine.low %v353, %v360
    %v376 = vcombine.low %v367, %v374
    %v378 = vunpack.c.l.s4 1966171168
    %v379 = vunpack.c.0.s8 %v378
    %v380 = vlaneseq
    %v381 = vshrl.u32 %v380, 7
    %v382 = vsub.s32 %v379, %v381
    %v383 = vrot.slane %v375, %v382
    %v385 = vunpack.c.l.s4 1966171168
    %v386 = vunpack.c.0.s8 %v385
    %v387 = vlaneseq
    %v388 = vshrl.u32 %v387, 7
    %v389 = vsub.s32 %v386, %v388
    %v390 = vrot.slane %v376, %v389
    %v391 = vcombine.low %v383, %v390
    %v392 = vcombine.low %v62, %v63
    %v393 = vcombine.low %v64, %v65
    %v394 = vcombine.low %v66, %v67
    %v395 = vcombine.low %v68, %v69
    %v397 = vunpack.c.l.s4 1966171168
    %v398 = vunpack.c.0.s8 %v397
    %v399 = vlaneseq
    %v400 = vshrl.u32 %v399, 7
    %v401 = vsub.s32 %v398, %v400
    %v402 = vrot.slane %v392, %v401
    %v404 = vunpack.c.l.s4 1966171168
    %v405 = vunpack.c.0.s8 %v404
    %v406 = vlaneseq
    %v407 = vshrl.u32 %v406, 7
    %v408 = vsub.s32 %v405, %v407
    %v409 = vrot.slane %v393, %v408
    %v411 = vunpack.c.l.s4 1966171168
    %v412 = vunpack.c.0.s8 %v411
    %v413 = vlaneseq
    %v414 = vshrl.u32 %v413, 7
    %v415 = vsub.s32 %v412, %v414
    %v416 = vrot.slane %v394, %v415
    %v418 = vunpack.c.l.s4 1966171168
    %v419 = vunpack.c.0.s8 %v418
    %v420 = vlaneseq
    %v421 = vshrl.u32 %v420, 7
    %v422 = vsub.s32 %v419, %v421
    %v423 = vrot.slane %v395, %v422
    %v424 = vcombine.low %v402, %v409
    %v425 = vcombine.low %v416, %v423
    %v427 = vunpack.c.l.s4 1966171168
    %v428 = vunpack.c.0.s8 %v427
    %v429 = vlaneseq
    %v430 = vshrl.u32 %v429, 7
    %v431 = vsub.s32 %v428, %v430
    %v432 = vrot.slane %v424, %v431
    %v434 = vunpack.c.l.s4 1966171168
    %v435 = vunpack.c.0.s8 %v434
    %v436 = vlaneseq
    %v437 = vshrl.u32 %v436, 7
    %v438 = vsub.s32 %v435, %v437
    %v439 = vrot.slane %v425, %v438
    %v440 = vcombine.low %v432, %v439
    %v441 = vcombine.low %v70, %v71
    %v442 = vcombine.low %v72, %v73
    %v443 = vcombine.low %v74, %v75
    %v444 = vcombine.low %v76, %v77
    %v446 = vunpack.c.l.s4 1966171168
    %v447 = vunpack.c.0.s8 %v446
    %v448 = vlaneseq
    %v449 = vshrl.u32 %v448, 7
    %v450 = vsub.s32 %v447, %v449
    %v451 = vrot.slane %v441, %v450
    %v453 = vunpack.c.l.s4 1966171168
    %v454 = vunpack.c.0.s8 %v453
    %v455 = vlaneseq
    %v456 = vshrl.u32 %v455, 7
    %v457 = vsub.s32 %v454, %v456
    %v458 = vrot.slane %v442, %v457
    %v460 = vunpack.c.l.s4 1966171168
    %v461 = vunpack.c.0.s8 %v460
    %v462 = vlaneseq
    %v463 = vshrl.u32 %v462, 7
    %v464 = vsub.s32 %v461, %v463
    %v465 = vrot.slane %v443, %v464
    %v467 = vunpack.c.l.s4 1966171168
    %v468 = vunpack.c.0.s8 %v467
    %v469 = vlaneseq
    %v470 = vshrl.u32 %v469, 7
    %v471 = vsub.s32 %v468, %v470
    %v472 = vrot.slane %v444, %v471
    %v473 = vcombine.low %v451, %v458
    %v474 = vcombine.low %v465, %v472
    %v476 = vunpack.c.l.s4 1966171168
    %v477 = vunpack.c.0.s8 %v476
    %v478 = vlaneseq
    %v479 = vshrl.u32 %v478, 7
    %v480 = vsub.s32 %v477, %v479
    %v481 = vrot.slane %v473, %v480
    %v483 = vunpack.c.l.s4 1966171168
    %v484 = vunpack.c.0.s8 %v483
    %v485 = vlaneseq
    %v486 = vshrl.u32 %v485, 7
    %v487 = vsub.s32 %v484, %v486
    %v488 = vrot.slane %v474, %v487
    %v489 = vcombine.low %v481, %v488
    %v490 = vcombine.low %v78, %v79
    %v491 = vcombine.low %v80, %v81
    %v492 = vcombine.low %v82, %v83
    %v493 = vcombine.low %v84, %v85
    %v495 = vunpack.c.l.s4 1966171168
    %v496 = vunpack.c.0.s8 %v495
    %v497 = vlaneseq
    %v498 = vshrl.u32 %v497, 7
    %v499 = vsub.s32 %v496, %v498
    %v500 = vrot.slane %v490, %v499
    %v502 = vunpack.c.l.s4 1966171168
    %v503 = vunpack.c.0.s8 %v502
    %v504 = vlaneseq
    %v505 = vshrl.u32 %v504, 7
    %v506 = vsub.s32 %v503, %v505
    %v507 = vrot.slane %v491, %v506
    %v509 = vunpack.c.l.s4 1966171168
    %v510 = vunpack.c.0.s8 %v509
    %v511 = vlaneseq
    %v512 = vshrl.u32 %v511, 7
    %v513 = vsub.s32 %v510, %v512
    %v514 = vrot.slane %v492, %v513
    %v516 = vunpack.c.l.s4 1966171168
    %v517 = vunpack.c.0.s8 %v516
    %v518 = vlaneseq
    %v519 = vshrl.u32 %v518, 7
    %v520 = vsub.s32 %v517, %v519
    %v521 = vrot.slane %v493, %v520
    %v522 = vcombine.low %v500, %v507
    %v523 = vcombine.low %v514, %v521
    %v525 = vunpack.c.l.s4 1966171168
    %v526 = vunpack.c.0.s8 %v525
    %v527 = vlaneseq
    %v528 = vshrl.u32 %v527, 7
    %v529 = vsub.s32 %v526, %v528
    %v530 = vrot.slane %v522, %v529
    %v532 = vunpack.c.l.s4 1966171168
    %v533 = vunpack.c.0.s8 %v532
    %v534 = vlaneseq
    %v535 = vshrl.u32 %v534, 7
    %v536 = vsub.s32 %v533, %v535
    %v537 = vrot.slane %v523, %v536
    %v538 = vcombine.low %v530, %v537
    %v539 = vcombine.low %v86, %v87
    %v540 = vcombine.low %v88, %v89
    %v541 = vcombine.low %v90, %v91
    %v542 = vcombine.low %v92, %v93
    %v544 = vunpack.c.l.s4 1966171168
    %v545 = vunpack.c.0.s8 %v544
    %v546 = vlaneseq
    %v547 = vshrl.u32 %v546, 7
    %v548 = vsub.s32 %v545, %v547
    %v549 = vrot.slane %v539, %v548
    %v551 = vunpack.c.l.s4 1966171168
    %v552 = vunpack.c.0.s8 %v551
    %v553 = vlaneseq
    %v554 = vshrl.u32 %v553, 7
    %v555 = vsub.s32 %v552, %v554
    %v556 = vrot.slane %v540, %v555
    %v558 = vunpack.c.l.s4 1966171168
    %v559 = vunpack.c.0.s8 %v558
    %v560 = vlaneseq
    %v561 = vshrl.u32 %v560, 7
    %v562 = vsub.s32 %v559, %v561
    %v563 = vrot.slane %v541, %v562
    %v565 = vunpack.c.l.s4 1966171168
    %v566 = vunpack.c.0.s8 %v565
    %v567 = vlaneseq
    %v568 = vshrl.u32 %v567, 7
    %v569 = vsub.s32 %v566, %v568
    %v570 = vrot.slane %v542, %v569
    %v571 = vcombine.low %v549, %v556
    %v572 = vcombine.low %v563, %v570
    %v574 = vunpack.c.l.s4 1966171168
    %v575 = vunpack.c.0.s8 %v574
    %v576 = vlaneseq
    %v577 = vshrl.u32 %v576, 7
    %v578 = vsub.s32 %v575, %v577
    %v579 = vrot.slane %v571, %v578
    %v581 = vunpack.c.l.s4 1966171168
    %v582 = vunpack.c.0.s8 %v581
    %v583 = vlaneseq
    %v584 = vshrl.u32 %v583, 7
    %v585 = vsub.s32 %v582, %v584
    %v586 = vrot.slane %v572, %v585
    %v587 = vcombine.low %v579, %v586
    %vm588 = vcmask 523264
    %v590 = vsel %vm588, %v130, 0
    %v593 = vsel %vm588, %v131, 0
    %v596 = vsel %vm588, %v244, 0
    %v599 = vsel %vm588, %v293, 0
    %v602 = vsel %vm588, %v342, 0
    %v605 = vsel %vm588, %v391, 0
    %v608 = vsel %vm588, %v440, 0
    %v611 = vsel %vm588, %v489, 0
    %v614 = vsel %vm588, %v538, 0
    %v617 = vsel %vm588, %v587, 0
    %619 = vmatprep.subr.bf16.mxu0 0
    %620 = vmatpush1.bf16.xpose.msra.mxu0 %v596
    %621 = vmatprep.subr.bf16.mxu0 0
    %622 = vmatpush1.bf16.xpose.msra.mxu0 %v599
    %623 = vmatprep.subr.bf16.mxu0 0
    %624 = vmatpush1.bf16.xpose.msra.mxu0 %v602
    %625 = vmatprep.subr.bf16.mxu0 0
    %626 = vmatpush1.bf16.xpose.msra.mxu0 %v605
    %627 = vmatprep.subr.bf16.mxu0 0
    %628 = vmatpush1.bf16.xpose.msra.mxu0 %v608
    %629 = vmatprep.subr.bf16.mxu0 0
    %630 = vmatpush1.bf16.xpose.msra.mxu0 %v611
    %631 = vmatprep.subr.bf16.mxu0 0
    %632 = vmatpush1.bf16.xpose.msra.mxu0 %v614
    %633 = vmatprep.subr.bf16.mxu0 0
    %634 = vmatpush1.bf16.xpose.msra.mxu0 %v617
    %635 = vmatprep.subr.bf16.mxu0 0
    %636 = vmatpush1.bf16.xpose.msra.mxu0 0
    %637 = vmatprep.subr.bf16.mxu0 0
    %638 = vmatpush1.bf16.xpose.msra.mxu0 0
    %639 = vmatprep.subr.bf16.mxu0 0
    %640 = vmatpush1.bf16.xpose.msra.mxu0 0
    %641 = vmatprep.subr.bf16.mxu0 0
    %642 = vmatpush1.bf16.xpose.msra.mxu0 0
    %643 = vmatprep.subr.bf16.mxu0 0
    %644 = vmatpush1.bf16.xpose.msra.mxu0 0
    %645 = vmatprep.subr.bf16.mxu0 0
    %646 = vmatpush1.bf16.xpose.msra.mxu0 0
    %647 = vmatprep.subr.bf16.mxu0 0
    %648 = vmatpush1.bf16.xpose.msra.mxu0 0
    %649 = vmatprep.subr.bf16.mxu0 0
    %650 = vmatpush1.bf16.xpose.msra.mxu0 0
    %651 = vmatprep.mubr.bf16.mxu0 0
    %652 = vmatmul.mubr.bf16.gmra.mrb[0].mxu0 %v590
    %v653 = vpop.f32.mrb[0].mxu0
    %v654 = vadd.f32 %v105, %v653
    %v655 = vpop.f32.mrb[0].mxu0
    %v656 = vpop.f32.mrb[0].mxu0
    %v657 = vadd.f32 %v110, %v656
    %v658 = vpop.f32.mrb[0].mxu0
    %659 = vmatprep.mubr.bf16.mxu0 0
    %660 = vmatmul.mubr.bf16.gmra.mrb[0].mxu0 %v593
    %v661 = vpop.f32.mrb[0].mxu0
    %v662 = vadd.f32 %v115, %v661
    %v663 = vpop.f32.mrb[0].mxu0
    %v664 = vpop.f32.mrb[0].mxu0
    %v665 = vadd.f32 %v120, %v664
    %v666 = vpop.f32.mrb[0].mxu0
    %667 = vdwg.mxu0
    %v668 = vmax.f32 %v654, 0.0
    %v669 = vmax.f32 %v657, 0.0
    %v670 = vmax.f32 %v662, 0.0
    %v671 = vmax.f32 %v665, 0.0
    %v672 = vld [vmem:[%s3] sm:$0xf]
    %v673 = vld [vmem:[%s3 + $0x4] sm:$0xf]
    %v674 = vpack.c.bf16 %v669, %v668
    %v675 = vpack.c.bf16 %v671, %v670
    %v676 = vld [vmem:[%s4] sm:$0xff]
    %v677 = vld [vmem:[%s4 + $0x8] sm:$0xff]
    %679 = vset.pattern.permute.xlu0 0
    %680 = vperm.xlu0 %679, %v676
    %v681 = vpop.permute.xlu0 %680
    %684 = vset.pattern.permute.xlu0 0
    %685 = vperm.xlu0 %684, %v677
    %v686 = vpop.permute.xlu0 %685
    %v690 = vunpack.c.l.b16 %v672
    %v691 = vunpack.c.l.b16 %v673
    %v692 = vpack.c.b16 %v691, %v690
    %vm693 = vcmask 261120
    %v695 = vsel %vm693, %v692, 0
    %697 = vmatprep.subr.bf16.mxu0 0
    %698 = vmatpush1.bf16.msra.mxu0 %v674
    %699 = vmatprep.subr.bf16.mxu0 0
    %700 = vmatpush1.bf16.msra.mxu0 %v675
    %701 = vmatprep.subr.bf16.mxu0 0
    %702 = vmatpush1.bf16.msra.mxu0 0
    %703 = vmatprep.subr.bf16.mxu0 0
    %704 = vmatpush1.bf16.msra.mxu0 0
    %705 = vmatprep.subr.bf16.mxu0 0
    %706 = vmatpush1.bf16.msra.mxu0 0
    %707 = vmatprep.subr.bf16.mxu0 0
    %708 = vmatpush1.bf16.msra.mxu0 0
    %709 = vmatprep.subr.bf16.mxu0 0
    %710 = vmatpush1.bf16.msra.mxu0 0
    %711 = vmatprep.subr.bf16.mxu0 0
    %712 = vmatpush1.bf16.msra.mxu0 0
    %713 = vmatprep.subr.bf16.mxu0 0
    %714 = vmatpush1.bf16.msra.mxu0 0
    %715 = vmatprep.subr.bf16.mxu0 0
    %716 = vmatpush1.bf16.msra.mxu0 0
    %717 = vmatprep.subr.bf16.mxu0 0
    %718 = vmatpush1.bf16.msra.mxu0 0
    %719 = vmatprep.subr.bf16.mxu0 0
    %720 = vmatpush1.bf16.msra.mxu0 0
    %721 = vmatprep.subr.bf16.mxu0 0
    %722 = vmatpush1.bf16.msra.mxu0 0
    %723 = vmatprep.subr.bf16.mxu0 0
    %724 = vmatpush1.bf16.msra.mxu0 0
    %725 = vmatprep.subr.bf16.mxu0 0
    %726 = vmatpush1.bf16.msra.mxu0 0
    %727 = vmatprep.subr.bf16.mxu0 0
    %728 = vmatpush1.bf16.msra.mxu0 0
    %729 = vmatprep.mubr.bf16.mxu0 0
    %730 = vmatmul.mubr.bf16.gmra.mrb[0].mxu0 %v695
    %v731 = vpop.f32.mrb[0].mxu0
    %v732 = vadd.f32 %v681, %v731
    %v733 = vpop.f32.mrb[0].mxu0
    %v734 = vpop.f32.mrb[0].mxu0
    %v735 = vadd.f32 %v686, %v734
    %v736 = vpop.f32.mrb[0].mxu0
    %737 = vdwg.mxu0
    %v738 = vmax.f32 %v732, 0.0
    %v739 = vmax.f32 %v735, 0.0
    %v740 = vld [vmem:[%s5] sm:$0xf]
    %v741 = vld [vmem:[%s5 + $0x4] sm:$0xf]
    %v742 = vunpack.c.l.bf16 %v740
    %v743 = vunpack.c.l.bf16 %v741
    %745 = vset.pattern.permute.xlu0 0
    %746 = vperm.xlu0 %745, %v742
    %v747 = vpop.permute.xlu0 %746
    %750 = vset.pattern.permute.xlu0 0
    %751 = vperm.xlu0 %750, %v743
    %v752 = vpop.permute.xlu0 %751
    %v754 = vmul.f32 %v747, %v738
    %v755 = vmul.f32 %v752, %v739
    %v756 = vadd.f32 %v754, %v755
    %v757 = vrot.slane %v756, 4
    %v758 = vadd.f32 %v756, %v757
    %v759 = vrot.slane %v758, 2
    %v760 = vadd.f32 %v758, %v759
    %v761 = vrot.slane %v760, 1
    %v762 = vadd.f32 %v760, %v761
    %v763 = vld [vmem:[#allocation2] sm:$0x1]
    %765 = vset.pattern.permute.xlu0 0
    %766 = vperm.xlu0 %765, %v763
    %v767 = vpop.permute.xlu0 %766
    %v769 = vlaneseq
    %v770 = vshrl.u32 %v769, 7
    %v771 = vsub.s32 0, %v770
    %v772 = vrot.slane %v767, %v771
    %v773 = vadd.f32 %v762, %v772
    %v774 = vxor.u32 %v773, 2147483648
    %v775 = vmul.f32 %v774, 1.442695
    %v776 = vpow.pop %v775
    %v777 = vadd.f32 %v776, 1.0
    %v778 = vrcp.pop %v777
    %v779 = vmul.f32 1.0, %v778
    %780 = vst [vmem:[#allocation3] sm:$0x1] %v779
    // Predicated region
    $region30: #{tpu_custom_call.1} parent=1 // pred_check
      _
    $region31: #{tpu_custom_call.1} parent=1 // pred_check_branch
      %782 = sbr.rel (0) target = $region33
    $region32: #{tpu_custom_call.1} parent=1 // pred_region
      %s784 = ssub.s32 16, 16
      %785 = vsyncadd [#allocation4], %s784
      %s787 = sshll.u32 [#allocation3], 4
      %s788 = int_to_ptr.vmem [resolvable:$true] %s787
      %790 = dma.vmem_to_hbm [thread:$0]  %s788, 16, %s7, [#allocation4]
    $region33: #{tpu_custom_call.1} parent=1 // pred_fallthru
      _
    // Predicated region
    $region34: #{tpu_custom_call.1} parent=1 // pred_check
      _
    $region35: #{tpu_custom_call.1} parent=1 // pred_check_branch
      %792 = sbr.rel (0) target = $region37
    $region36: #{tpu_custom_call.1} parent=1 // pred_region
      %793 = dma.done [#allocation4], 16
    $region37: #{tpu_custom_call.1} parent=1 // pred_fallthru
      _
    %794 = vsyncpa [#allocation4], 1

</llo_original>
